<compile_context>
chip_gen: v6e
topology: v6e:2x2x1
jax: 0.10.0
libtpu: 0.0.40
codegen_flags: <defaults>
</compile_context>

<pallas_src>
import functools

import jax
import jax.numpy as jnp
from jax.experimental import pallas as pl
from jax.experimental.pallas import tpu as pltpu


def _fused_affine_kernel(w_ref, b_ref, x_ref, o_ref):
    # x_ref: (tbf, 128)  folded activations (16 batch rows per folded row)
    # w_ref: (128, 16*C) block-diagonal fused weight (grid-invariant, resident)
    # b_ref: (1, 16*C)   tiled fused bias
    # o_ref: (tbf, 16*C) folded output (lane-dense, unmasked stores)
    y = jnp.dot(x_ref[...], w_ref[...], preferred_element_type=jnp.float32)
    o_ref[...] = (y + b_ref[...]).astype(o_ref.dtype)


@functools.partial(jax.jit, static_argnames=("block_b", "force_pallas"))
def net1_forward(x, w1_t, b1, w2_t, b2, *, block_b=32768, force_pallas=False):
    """Forward pass of net1: fc2(fc1(x)).

    x:    (B, 8) float32
    w1_t: (8, 4)   = fc1.weight.T
    b1:   (1, 4)   = fc1.bias[None, :]
    w2_t: (4, C)   = fc2.weight.T
    b2:   (1, C)   = fc2.bias[None, :]
    returns (B, C)
    """
    B, in_f = x.shape
    num_class = w2_t.shape[1]

    # --- Fuse the two affine layers (tiny, done once outside the kernel) ---
    #   y = (x @ W1^T + b1) @ W2^T + b2  ==  x @ W_f + b_f
    w_f = w1_t @ w2_t                      # (in_f, C)
    b_f = b1 @ w2_t + b2                   # (1, C)

    # --- Small-batch fast path: kernel-launch fixed costs dominate here ---
    if (not force_pallas) and B < 2048:
        return x @ w_f + b_f

    # --- Fold 16 batch rows onto the 128-wide lane axis (free reshape) ---
    fold = 128 // in_f                     # 16
    cf = fold * num_class                  # 160 for num_class=10

    bp = pl.cdiv(B, 128) * 128             # pad B to a multiple of 128 rows
    xp = x if bp == B else jnp.pad(x, ((0, bp - B), (0, 0)))
    bf_rows = bp // fold                   # folded batch (multiple of 8)
    x_f = xp.reshape(bf_rows, fold * in_f)  # (BF, 128), row-major bitcast

    # Block-diagonal fused weight / tiled bias so the folded matmul is exact:
    #   y_f[r, C*j + m] = sum_k x[16r+j, k] * W_f[k, m] + b_f[m]
    w_big = jnp.kron(jnp.eye(fold, dtype=x.dtype), w_f)   # (128, 16*C)
    b_big = jnp.tile(b_f, (1, fold))                       # (1, 16*C)

    # --- Tile size: big (roofline), multiple of 8 folded rows, but keep
    #     enough grid steps for v7x's two TensorCores; cap for VMEM safety ---
    block_b = max(2048, (int(block_b) // 128) * 128)        # sanitize
    cap_f = min(block_b // fold, 4096)                      # folded-row cap
    want_f = ((pl.cdiv(bf_rows, 8) + 63) // 64) * 64        # aim >= ~8 steps
    tbf = max(8, min(cap_f, want_f, bf_rows))

    grid = (pl.cdiv(bf_rows, tbf),)        # ragged last block handled by Pallas

    y_f = pl.pallas_call(
        _fused_affine_kernel,
        out_shape=jax.ShapeDtypeStruct((bf_rows, cf), x.dtype),
        grid=grid,
        in_specs=[
            # Fused weight / bias: tiny, grid-invariant -> resident in VMEM.
            pl.BlockSpec((fold * in_f, cf), lambda i: (0, 0)),
            pl.BlockSpec((1, cf), lambda i: (0, 0)),
            # Folded activations: streamed over the batch, double-buffered.
            pl.BlockSpec((tbf, fold * in_f), lambda i: (i, 0)),
        ],
        out_specs=pl.BlockSpec((tbf, cf), lambda i: (i, 0)),
        compiler_params=pltpu.CompilerParams(
            dimension_semantics=("parallel",),  # v7x: shard batch grid over 2 TCs
        ),
        cost_estimate=pl.CostEstimate(
            flops=2 * bf_rows * (fold * in_f) * cf,
            transcendentals=0,
            bytes_accessed=4 * (bf_rows * (fold * in_f + cf)
                                + (fold * in_f + 1) * cf),
        ),
    )(w_big, b_big, x_f)

    y = y_f.reshape(bp, num_class)         # free row-major reshape back
    return y[:B] if bp != B else y


def init_params(key, num_class=10):
    """Deterministic init mimicking torch.nn.Linear default:
    U(-1/sqrt(fan_in), 1/sqrt(fan_in)) for both weight and bias."""
    k1w, k1b, k2w, k2b = jax.random.split(key, 4)
    bound1 = 1.0 / jnp.sqrt(8.0)
    w1 = jax.random.uniform(k1w, (4, 8), jnp.float32, -bound1, bound1)
    b1 = jax.random.uniform(k1b, (4,), jnp.float32, -bound1, bound1)
    bound2 = 1.0 / jnp.sqrt(4.0)
    w2 = jax.random.uniform(k2w, (num_class, 4), jnp.float32, -bound2, bound2)
    b2 = jax.random.uniform(k2b, (num_class,), jnp.float32, -bound2, bound2)
    return w1.T, b1[None, :], w2.T, b2[None, :]


def _ref(x, w1_t, b1, w2_t, b2):
    return (x @ w1_t + b1) @ w2_t + b2


if __name__ == "__main__":
    key = jax.random.PRNGKey(0)
    kx, kp = jax.random.split(key)
    w1_t, b1, w2_t, b2 = init_params(kp, num_class=10)

    # 1) Small batch through the Pallas kernel itself (forced), and fast path.
    x_small = jax.random.normal(kx, (2, 8), dtype=jnp.float32)
    out_k = jax.block_until_ready(
        net1_forward(x_small, w1_t, b1, w2_t, b2, force_pallas=True))
    out_f = jax.block_until_ready(net1_forward(x_small, w1_t, b1, w2_t, b2))
    ref_s = _ref(x_small, w1_t, b1, w2_t, b2)
    assert out_k.shape == (2, 10) and out_f.shape == (2, 10)
    assert jnp.allclose(out_k, ref_s, atol=1e-5, rtol=1e-5)
    assert jnp.allclose(out_f, ref_s, atol=1e-5, rtol=1e-5)

    # 2) Batch that is a multiple of 128 -> no pad, 2 grid steps.
    x_a = jax.random.normal(kx, (2048, 8), dtype=jnp.float32)
    out_a = jax.block_until_ready(net1_forward(x_a, w1_t, b1, w2_t, b2))
    assert out_a.shape == (2048, 10)
    assert jnp.allclose(out_a, _ref(x_a, w1_t, b1, w2_t, b2), atol=1e-4, rtol=1e-4)

    # 3) Batch that is not a multiple of 128 -> small pad path.
    x_b = jax.random.normal(kx, (4000, 8), dtype=jnp.float32)
    out_b = jax.block_until_ready(net1_forward(x_b, w1_t, b1, w2_t, b2))
    assert out_b.shape == (4000, 10)
    assert jnp.allclose(out_b, _ref(x_b, w1_t, b1, w2_t, b2), atol=1e-4, rtol=1e-4)

    # 4) Batch whose folded grid has a ragged trailing block.
    x_c = jax.random.normal(kx, (6272, 8), dtype=jnp.float32)
    out_c = jax.block_until_ready(net1_forward(x_c, w1_t, b1, w2_t, b2))
    assert out_c.shape == (6272, 10)
    assert jnp.allclose(out_c, _ref(x_c, w1_t, b1, w2_t, b2), atol=1e-4, rtol=1e-4)

    print("KERNEL_OK")
</pallas_src>

<mosaic_0001>
module attributes {stable_mosaic.version = 11 : i64} {
  func.func @_fused_affine_kernel(%arg0: i32, %arg1: memref<128x160xf32, #tpu.memory_space<vmem>>, %arg2: memref<1x160xf32, #tpu.memory_space<vmem>>, %arg3: memref<8x128xf32, #tpu.memory_space<vmem>>, %arg4: memref<8x160xf32, #tpu.memory_space<vmem>>) attributes {dimension_semantics = [#tpu.dimension_semantics<parallel>], iteration_bounds = array<i64: 1>, scalar_prefetch = 0 : i64, scratch_operands = 0 : i64, tpu.core_type = #tpu.core_type<tc>, window_params = [{pipeline_mode = #tpu.pipeline_mode<synchronous>, transform_indices = @transform_0, window_bounds = array<i64: 128, 160>}, {pipeline_mode = #tpu.pipeline_mode<synchronous>, transform_indices = @transform_1, window_bounds = array<i64: 1, 160>}, {transform_indices = @transform_2, window_bounds = array<i64: 8, 128>}, {transform_indices = @transform_3, window_bounds = array<i64: 8, 160>}]} {
    %c0 = arith.constant 0 : index
    %c0_0 = arith.constant 0 : index
    %0 = vector.load %arg3[%c0, %c0_0] : memref<8x128xf32, #tpu.memory_space<vmem>>, vector<8x128xf32>
    %c0_1 = arith.constant 0 : index
    %c0_2 = arith.constant 0 : index
    %1 = vector.load %arg1[%c0_1, %c0_2] : memref<128x160xf32, #tpu.memory_space<vmem>>, vector<128x160xf32>
    %cst = arith.constant dense<0.000000e+00> : vector<8x160xf32>
    %2 = tpu.matmul %0, %1, %cst {dimension_numbers = #tpu.dot_dimension_numbers<[1], [0], [0], [1], [0, 0, 1, 1], [], []>} : vector<8x128xf32>, vector<128x160xf32>, vector<8x160xf32> -> vector<8x160xf32>
    %c0_3 = arith.constant 0 : index
    %c0_4 = arith.constant 0 : index
    %3 = vector.load %arg2[%c0_3, %c0_4] : memref<1x160xf32, #tpu.memory_space<vmem>>, vector<1x160xf32>
    %4 = vector.broadcast %3 : vector<1x160xf32> to vector<8x160xf32>
    %5 = arith.addf %2, %4 : vector<8x160xf32>
    %c0_5 = arith.constant 0 : index
    %c0_6 = arith.constant 0 : index
    %6 = vector.load %arg4[%c0_5, %c0_6] : memref<8x160xf32, #tpu.memory_space<vmem>>, vector<8x160xf32>
    tpu.vector_store %arg4[%c0_5, %c0_6], %5 {strides = array<i32>} : memref<8x160xf32, #tpu.memory_space<vmem>>, vector<8x160xf32>,
    return
  }
  func.func @transform_0(%arg0: i32) -> (i32, i32) {
    %c0_i32 = arith.constant 0 : i32
    %c0_i32_0 = arith.constant 0 : i32
    %c0_i32_1 = arith.constant 0 : i32
    return %c0_i32, %c0_i32_0 : i32, i32
  }
  func.func @transform_1(%arg0: i32) -> (i32, i32) {
    %c0_i32 = arith.constant 0 : i32
    %c0_i32_0 = arith.constant 0 : i32
    %c0_i32_1 = arith.constant 0 : i32
    return %c0_i32, %c0_i32_0 : i32, i32
  }
  func.func @transform_2(%arg0: i32) -> (i32, i32) {
    %c0_i32 = arith.constant 0 : i32
    %c0_i32_0 = arith.constant 0 : i32
    return %arg0, %c0_i32 : i32, i32
  }
  func.func @transform_3(%arg0: i32) -> (i32, i32) {
    %c0_i32 = arith.constant 0 : i32
    %c0_i32_0 = arith.constant 0 : i32
    return %arg0, %c0_i32 : i32, i32
  }
}

</mosaic_0001>

<llo_original>
// kernel: net1_forward.1
$region0: #{net1_forward.1}
  #allocation0 [shape = 'u32[]', space=smem, size = 0x4, offset = 0x4, fixed_abs, tag = 'smem constant byte address 0x4 - core index']
  #allocation1 [shape = 'u32[144,128]{1,0:T(1,128)}', space=vmem, size = 0x12000, scoped, tag = 'internal scratch']
  %s0 = inlined_call_operand.vmem [shape: f32[128,160], index: 0, kind: input, shape index: {}]
  %s1 = inlined_call_operand.vmem [shape: f32[1,160], index: 1, kind: input, shape index: {}]
  %s2 = inlined_call_operand.vmem [shape: f32[8,128], index: 2, kind: input, shape index: {}]
  %s3 = inlined_call_operand.vmem [shape: f32[8,160], index: 3, kind: output, shape index: {}]
  %s4 = sld [smem:[#allocation0]]
  $region22: #{net1_forward.1} parent=0
    _
  %s6 = ssub.s32 1, %s4
  %s7 = scalar_select 0, %s6, %s4
  // Predicated region
  $region2: #{net1_forward.1} parent=0 // pred_check
    _
  $region3: #{net1_forward.1} parent=0 // pred_check_branch
    %9 = sbr.rel (0) target = $region5
  $region4: #{net1_forward.1} parent=0 // pred_region
    _
  $region5: #{net1_forward.1} parent=0 // pred_fallthru
    _
  // Predicated region
  $region6: #{net1_forward.1} parent=0 // pred_check
    _
  $region7: #{net1_forward.1} parent=0 // pred_check_branch
    %11 = sbr.rel (0) target = $region9
  $region8: #{net1_forward.1} parent=0 // pred_region
    _
  $region9: #{net1_forward.1} parent=0 // pred_fallthru
    _
  // Predicated region
  $region10: #{net1_forward.1} parent=0 // pred_check
    _
  $region11: #{net1_forward.1} parent=0 // pred_check_branch
    %13 = sbr.rel (0) target = $region13
  $region12: #{net1_forward.1} parent=0 // pred_region
    _
  $region13: #{net1_forward.1} parent=0 // pred_fallthru
    _
  %v14 = vld [vmem:[%s2] sm:$0xff]
  %v15 = vld [vmem:[%s0] sm:$0xff]
  %v16 = vld [vmem:[%s0 + $0x8] sm:$0xff]
  %v17 = vld [vmem:[%s0 + $0x10] sm:$0xff]
  %v18 = vld [vmem:[%s0 + $0x18] sm:$0xff]
  %v19 = vld [vmem:[%s0 + $0x20] sm:$0xff]
  %v20 = vld [vmem:[%s0 + $0x28] sm:$0xff]
  %v21 = vld [vmem:[%s0 + $0x30] sm:$0xff]
  %v22 = vld [vmem:[%s0 + $0x38] sm:$0xff]
  %v23 = vld [vmem:[%s0 + $0x40] sm:$0xff]
  %v24 = vld [vmem:[%s0 + $0x48] sm:$0xff]
  %v25 = vld [vmem:[%s0 + $0x50] sm:$0xff]
  %v26 = vld [vmem:[%s0 + $0x58] sm:$0xff]
  %v27 = vld [vmem:[%s0 + $0x60] sm:$0xff]
  %v28 = vld [vmem:[%s0 + $0x68] sm:$0xff]
  %v29 = vld [vmem:[%s0 + $0x70] sm:$0xff]
  %v30 = vld [vmem:[%s0 + $0x78] sm:$0xff]
  %v31 = vld [vmem:[%s0 + $0x80] sm:$0xff]
  %v32 = vld [vmem:[%s0 + $0x88] sm:$0xff]
  %v33 = vld [vmem:[%s0 + $0x90] sm:$0xff]
  %v34 = vld [vmem:[%s0 + $0x98] sm:$0xff]
  %v35 = vld [vmem:[%s0 + $0xa0] sm:$0xff]
  %v36 = vld [vmem:[%s0 + $0xa8] sm:$0xff]
  %v37 = vld [vmem:[%s0 + $0xb0] sm:$0xff]
  %v38 = vld [vmem:[%s0 + $0xb8] sm:$0xff]
  %v39 = vld [vmem:[%s0 + $0xc0] sm:$0xff]
  %v40 = vld [vmem:[%s0 + $0xc8] sm:$0xff]
  %v41 = vld [vmem:[%s0 + $0xd0] sm:$0xff]
  %v42 = vld [vmem:[%s0 + $0xd8] sm:$0xff]
  %v43 = vld [vmem:[%s0 + $0xe0] sm:$0xff]
  %v44 = vld [vmem:[%s0 + $0xe8] sm:$0xff]
  %v45 = vld [vmem:[%s0 + $0xf0] sm:$0xff]
  %v46 = vld [vmem:[%s0 + $0xf8] sm:$0xff]
  %v47 = vld [vmem:[%s1] sm:$0x3]
  %v49 = vlaneseq
  %v50 = vshrl.u32 %v49, 7
  %v51 = vsub.s32 0, %v50
  %v52 = vrot.slane %v47, %v51
  %v53 = vlaneseq
  %v54 = vshrl.u32 %v53, 7
  %v55 = vsub.s32 1, %v54
  %v56 = vrot.slane %v47, %v55
  %59 = vmatprep.subr.mxu0 %v46
  %60 = vmatpush1.msra.mxu0 %v45
  %61 = vmatprep.subr.mxu0 %v44
  %62 = vmatpush1.msra.mxu0 %v43
  %63 = vmatprep.subr.mxu0 %v42
  %64 = vmatpush1.msra.mxu0 %v41
  %65 = vmatprep.subr.mxu0 %v40
  %66 = vmatpush1.msra.mxu0 %v39
  %67 = vmatprep.subr.mxu0 %v38
  %68 = vmatpush1.msra.mxu0 %v37
  %69 = vmatprep.subr.mxu0 %v36
  %70 = vmatpush1.msra.mxu0 %v35
  %71 = vmatprep.subr.mxu0 %v34
  %72 = vmatpush1.msra.mxu0 %v33
  %73 = vmatprep.subr.mxu0 %v32
  %74 = vmatpush1.msra.mxu0 %v31
  %75 = vmatprep.subr.mxu0 %v30
  %76 = vmatpush1.msra.mxu0 %v29
  %77 = vmatprep.subr.mxu0 %v28
  %78 = vmatpush1.msra.mxu0 %v27
  %79 = vmatprep.subr.mxu0 %v26
  %80 = vmatpush1.msra.mxu0 %v25
  %81 = vmatprep.subr.mxu0 %v24
  %82 = vmatpush1.msra.mxu0 %v23
  %83 = vmatprep.subr.mxu0 %v22
  %84 = vmatpush1.msra.mxu0 %v21
  %85 = vmatprep.subr.mxu0 %v20
  %86 = vmatpush1.msra.mxu0 %v19
  %87 = vmatprep.subr.mxu0 %v18
  %88 = vmatpush1.msra.mxu0 %v17
  %89 = vmatprep.subr.mxu0 %v16
  %90 = vmatpush1.msra.mxu0 %v15
  %91 = vmatprep.subr.mxu0 0.0
  %92 = vmatpush2.msra.mxu0 0.0
  %93 = vmatprep.subr.mxu0 0.0
  %94 = vmatpush2.msra.mxu0 0.0
  %95 = vmatprep.subr.mxu0 0.0
  %96 = vmatpush2.msra.mxu0 0.0
  %97 = vmatprep.subr.mxu0 0.0
  %98 = vmatpush2.msra.mxu0 0.0
  %99 = vmatprep.subr.mxu0 0.0
  %100 = vmatpush2.msra.mxu0 0.0
  %101 = vmatprep.subr.mxu0 0.0
  %102 = vmatpush2.msra.mxu0 0.0
  %103 = vmatprep.subr.mxu0 0.0
  %104 = vmatpush2.msra.mxu0 0.0
  %105 = vmatprep.subr.mxu0 0.0
  %106 = vmatpush2.msra.mxu0 0.0
  %107 = vmatprep.subr.mxu0 0.0
  %108 = vmatpush2.msra.mxu0 0.0
  %109 = vmatprep.subr.mxu0 0.0
  %110 = vmatpush2.msra.mxu0 0.0
  %111 = vmatprep.subr.mxu0 0.0
  %112 = vmatpush2.msra.mxu0 0.0
  %113 = vmatprep.subr.mxu0 0.0
  %114 = vmatpush2.msra.mxu0 0.0
  %115 = vmatprep.subr.mxu0 0.0
  %116 = vmatpush2.msra.mxu0 0.0
  %117 = vmatprep.subr.mxu0 0.0
  %118 = vmatpush2.msra.mxu0 0.0
  %119 = vmatprep.subr.mxu0 0.0
  %120 = vmatpush2.msra.mxu0 0.0
  %121 = vmatprep.subr.mxu0 0.0
  %122 = vmatpush2.msra.mxu0 0.0
  %123 = vmatprep.mubr.f32.mxu0 0.0
  %124 = vmatmul.mubr.f32.gmra.mxu0 %v14
  %v125 = vpop.f32.mrf.mxu0
  %v126 = vadd.f32 %v52, %v125
  %v127 = vpop.f32.mrf.mxu0
  %v128 = vadd.f32 %v56, %v127
  %129 = vdwg.mxu0
  %130 = vst [vmem:[%s3] sm:$0xff] %v126
  %vm131 = vcmask 261120
  %132 = vst.msk [vmem:[%s3 + $0x8] sm:$0xff] %vm131, %v128
  // Predicated region
  $region14: #{net1_forward.1} parent=0 // pred_check
    _
  $region15: #{net1_forward.1} parent=0 // pred_check_branch
    %134 = sbr.rel (0) target = $region17
  $region16: #{net1_forward.1} parent=0 // pred_region
    _
  $region17: #{net1_forward.1} parent=0 // pred_fallthru
    _
  // Predicated region
  $region18: #{net1_forward.1} parent=0 // pred_check
    _
  $region19: #{net1_forward.1} parent=0 // pred_check_branch
    %136 = sbr.rel (0) target = $region21
  $region20: #{net1_forward.1} parent=0 // pred_region
    _
  $region21: #{net1_forward.1} parent=0 // pred_fallthru
    _

</llo_original>
